<compile_context>
chip_gen: v7x
topology: tpu7x:2x2x1
jax: 0.10.0
libtpu: 0.0.40
codegen_flags: <defaults>
</compile_context>

<pallas_src>
import jax
import jax.numpy as jnp
from jax.experimental import pallas as pl
from jax.experimental.pallas import tpu as pltpu

STATE_DIM = 2
HIDDEN_DIM = 64
ACTION_DIM = 2
OUT_SUB = 8          # fc3 output padded to 8 sublanes (>= ACTION_DIM)
LANE = 128           # batch (lane) granularity
BATCH_TILE = 2048    # max batch lanes per grid step (multiple of LANE)


def qnet_kernel(x_ref, w1t_ref, b1t_ref, w2t_ref, b2t_ref, w3t_ref, b3t_ref, o_ref):
    # x_ref: (STATE_DIM, TB), batch-in-lane.
    x0 = x_ref[0:1, :]                                   # (1, TB)
    x1 = x_ref[1:2, :]                                   # (1, TB)

    # ---- fc1 + ReLU: K=2 -> two VPU broadcast FMAs, no MXU round-trip ----
    h1 = w1t_ref[:, 0:1] * x0 + w1t_ref[:, 1:2] * x1 + b1t_ref[...]   # (64, TB)
    h1 = jnp.maximum(h1, 0.0)

    # ---- fc2 + ReLU: (64,64) @ (64,TB) on the MXU, f32 accumulate ----
    h2 = jnp.dot(w2t_ref[...], h1, preferred_element_type=jnp.float32) + b2t_ref[...]
    h2 = jnp.maximum(h2, 0.0)

    # ---- fc3: (8,64) @ (64,TB) -> (8, TB); rows >= ACTION_DIM are zeros ----
    out = jnp.dot(w3t_ref[...], h2, preferred_element_type=jnp.float32) + b3t_ref[...]
    o_ref[...] = out.astype(o_ref.dtype)                 # lane-dense (8, TB) store


def _choose_tiling(batch, batch_tile=BATCH_TILE):
    """Pad batch to a multiple of 128 lanes; pick a tile (multiple of 128) that
    divides the padded batch exactly, is <= batch_tile, and yields >= 2 grid
    steps when possible (v7x megacore)."""
    padded = max(LANE, pl.cdiv(batch, LANE) * LANE)
    n_groups = padded // LANE
    max_groups = max(1, batch_tile // LANE)
    tile_groups = 1
    for cand in range(min(max_groups, n_groups), 0, -1):
        if n_groups % cand == 0 and (n_groups == 1 or n_groups // cand >= 2):
            tile_groups = cand
            break
    return padded, tile_groups * LANE


def prepare_params(params):
    """One-time prep: transpose to (out_features, in_features) for the
    batch-in-lane layout and zero-pad fc3 to 8 output sublanes."""
    w1, b1, w2, b2, w3, b3 = params            # w: (in, out), b: (1, out)
    w1t = jnp.asarray(w1.T, jnp.float32)                        # (64, 2)
    b1t = jnp.asarray(b1.reshape(HIDDEN_DIM, 1), jnp.float32)   # (64, 1)
    w2t = jnp.asarray(w2.T, jnp.float32)                        # (64, 64)
    b2t = jnp.asarray(b2.reshape(HIDDEN_DIM, 1), jnp.float32)   # (64, 1)
    w3t = jnp.zeros((OUT_SUB, HIDDEN_DIM), jnp.float32).at[:ACTION_DIM, :].set(w3.T)
    b3t = jnp.zeros((OUT_SUB, 1), jnp.float32).at[:ACTION_DIM, :].set(
        b3.reshape(ACTION_DIM, 1))
    return (w1t, b1t, w2t, b2t, w3t, b3t)


@jax.jit
def qnet_forward(obs, prepared):
    """obs: (batch, STATE_DIM) float32. Returns (batch, ACTION_DIM) float32."""
    w1t, b1t, w2t, b2t, w3t, b3t = prepared
    batch = obs.shape[0]
    padded, tile = _choose_tiling(batch)

    # Transpose to batch-in-lane and zero-pad the lane (batch) axis.
    obs_t = jnp.zeros((STATE_DIM, padded), jnp.float32).at[:, :batch].set(obs.T)

    grid = (padded // tile,)
    const = lambda a: pl.BlockSpec(a.shape, lambda i: (0,) * a.ndim)

    out_t = pl.pallas_call(
        qnet_kernel,
        out_shape=jax.ShapeDtypeStruct((OUT_SUB, padded), jnp.float32),
        grid=grid,
        in_specs=[
            pl.BlockSpec((STATE_DIM, tile), lambda i: (0, i)),
            const(w1t), const(b1t),
            const(w2t), const(b2t),
            const(w3t), const(b3t),
        ],
        out_specs=pl.BlockSpec((OUT_SUB, tile), lambda i: (0, i)),
        compiler_params=pltpu.CompilerParams(
            dimension_semantics=("parallel",),   # shard batch tiles across TCs (v7x)
        ),
    )(obs_t, w1t, b1t, w2t, b2t, w3t, b3t)

    # (8, padded) -> (batch, ACTION_DIM): only 2*batch elements read back.
    return out_t[:ACTION_DIM, :batch].T


def init_params(key):
    """Mirror nn.Linear defaults (uniform +/- 1/sqrt(fan_in)); weights stored
    as (in_features, out_features) so reference is y = x @ W + b."""
    def linear(k, fan_in, fan_out):
        kw, kb = jax.random.split(k)
        bound = 1.0 / jnp.sqrt(fan_in)
        w = jax.random.uniform(kw, (fan_in, fan_out), jnp.float32, -bound, bound)
        b = jax.random.uniform(kb, (1, fan_out), jnp.float32, -bound, bound)
        return w, b

    k1, k2, k3 = jax.random.split(key, 3)
    w1, b1 = linear(k1, STATE_DIM, HIDDEN_DIM)
    w2, b2 = linear(k2, HIDDEN_DIM, HIDDEN_DIM)
    w3, b3 = linear(k3, HIDDEN_DIM, ACTION_DIM)
    return (w1, b1, w2, b2, w3, b3)


def reference_forward(obs, params):
    w1, b1, w2, b2, w3, b3 = params
    h1 = jnp.maximum(obs @ w1 + b1, 0.0)
    h2 = jnp.maximum(h1 @ w2 + b2, 0.0)
    return h2 @ w3 + b3


if __name__ == "__main__":
    key = jax.random.PRNGKey(0)
    kp, kx, kb1, kb2 = jax.random.split(key, 4)
    raw_params = init_params(kp)
    prepared = prepare_params(raw_params)   # one-time: hoisted out of per-call path

    # Source script's obs is a (2, 2) array: batch of 2 observations of dim 2.
    obs = jax.random.normal(kx, (2, STATE_DIM), jnp.float32)
    out = jax.block_until_ready(qnet_forward(obs, prepared))
    ref = reference_forward(obs, raw_params)
    assert out.shape == (2, ACTION_DIM)
    assert jnp.allclose(out, ref, atol=1e-5, rtol=1e-5), "mismatch (batch=2)"

    # Multi-step grid (tile=256, grid=(2,)): exercises the v7x 2-TC sharding path.
    obs_big = jax.random.normal(kb1, (512, STATE_DIM), jnp.float32)
    out_big = jax.block_until_ready(qnet_forward(obs_big, prepared))
    assert out_big.shape == (512, ACTION_DIM)
    assert jnp.allclose(out_big, reference_forward(obs_big, raw_params),
                        atol=1e-5, rtol=1e-5), "mismatch (batch=512)"

    # Odd batch: adaptive tiling (300 -> padded 384, tile=128, grid=(3,)),
    # padded columns discarded by the wrapper slice.
    obs_odd = jax.random.normal(kb2, (300, STATE_DIM), jnp.float32)
    out_odd = jax.block_until_ready(qnet_forward(obs_odd, prepared))
    assert out_odd.shape == (300, ACTION_DIM)
    assert jnp.allclose(out_odd, reference_forward(obs_odd, raw_params),
                        atol=1e-5, rtol=1e-5), "mismatch (batch=300)"

    print("KERNEL_OK")
</pallas_src>

<mosaic_0001>
module attributes {stable_mosaic.version = 11 : i64} {
  func.func @qnet_kernel(%arg0: i32, %arg1: memref<2x128xf32, #tpu.memory_space<vmem>>, %arg2: memref<64x2xf32, #tpu.memory_space<vmem>>, %arg3: memref<64x1xf32, #tpu.memory_space<vmem>>, %arg4: memref<64x64xf32, #tpu.memory_space<vmem>>, %arg5: memref<64x1xf32, #tpu.memory_space<vmem>>, %arg6: memref<8x64xf32, #tpu.memory_space<vmem>>, %arg7: memref<8x1xf32, #tpu.memory_space<vmem>>, %arg8: memref<8x128xf32, #tpu.memory_space<vmem>>) attributes {dimension_semantics = [#tpu.dimension_semantics<parallel>], iteration_bounds = array<i64: 1>, scalar_prefetch = 0 : i64, scratch_operands = 0 : i64, tpu.core_type = #tpu.core_type<tc>, window_params = [{transform_indices = @transform_0, window_bounds = array<i64: 2, 128>}, {pipeline_mode = #tpu.pipeline_mode<synchronous>, transform_indices = @transform_1, window_bounds = array<i64: 64, 2>}, {pipeline_mode = #tpu.pipeline_mode<synchronous>, transform_indices = @transform_2, window_bounds = array<i64: 64, 1>}, {pipeline_mode = #tpu.pipeline_mode<synchronous>, transform_indices = @transform_3, window_bounds = array<i64: 64, 64>}, {pipeline_mode = #tpu.pipeline_mode<synchronous>, transform_indices = @transform_4, window_bounds = array<i64: 64, 1>}, {pipeline_mode = #tpu.pipeline_mode<synchronous>, transform_indices = @transform_5, window_bounds = array<i64: 8, 64>}, {pipeline_mode = #tpu.pipeline_mode<synchronous>, transform_indices = @transform_6, window_bounds = array<i64: 8, 1>}, {transform_indices = @transform_7, window_bounds = array<i64: 8, 128>}]} {
    %c0 = arith.constant 0 : index
    %c0_0 = arith.constant 0 : index
    %0 = vector.load %arg1[%c0, %c0_0] : memref<2x128xf32, #tpu.memory_space<vmem>>, vector<1x128xf32>
    %c1 = arith.constant 1 : index
    %c0_1 = arith.constant 0 : index
    %1 = vector.load %arg1[%c1, %c0_1] : memref<2x128xf32, #tpu.memory_space<vmem>>, vector<1x128xf32>
    %c0_2 = arith.constant 0 : index
    %c0_3 = arith.constant 0 : index
    %2 = vector.load %arg2[%c0_2, %c0_3] : memref<64x2xf32, #tpu.memory_space<vmem>>, vector<64x1xf32>
    %3 = vector.broadcast %2 : vector<64x1xf32> to vector<64x128xf32>
    %4 = vector.broadcast %0 : vector<1x128xf32> to vector<64x128xf32>
    %5 = arith.mulf %3, %4 : vector<64x128xf32>
    %c0_4 = arith.constant 0 : index
    %c1_5 = arith.constant 1 : index
    %6 = vector.load %arg2[%c0_4, %c1_5] : memref<64x2xf32, #tpu.memory_space<vmem>>, vector<64x1xf32>
    %7 = vector.broadcast %6 : vector<64x1xf32> to vector<64x128xf32>
    %8 = vector.broadcast %1 : vector<1x128xf32> to vector<64x128xf32>
    %9 = arith.mulf %7, %8 : vector<64x128xf32>
    %10 = arith.addf %5, %9 : vector<64x128xf32>
    %c0_6 = arith.constant 0 : index
    %c0_7 = arith.constant 0 : index
    %11 = vector.load %arg3[%c0_6, %c0_7] : memref<64x1xf32, #tpu.memory_space<vmem>>, vector<64x1xf32>
    %12 = vector.broadcast %11 : vector<64x1xf32> to vector<64x128xf32>
    %13 = arith.addf %10, %12 : vector<64x128xf32>
    %cst = arith.constant 0.000000e+00 : f32
    %14 = vector.broadcast %cst : f32 to vector<64x128xf32>
    %15 = arith.maximumf %13, %14 : vector<64x128xf32>
    %c0_8 = arith.constant 0 : index
    %c0_9 = arith.constant 0 : index
    %16 = vector.load %arg4[%c0_8, %c0_9] : memref<64x64xf32, #tpu.memory_space<vmem>>, vector<64x64xf32>
    %cst_10 = arith.constant dense<0.000000e+00> : vector<64x128xf32>
    %17 = tpu.matmul %16, %15, %cst_10 {dimension_numbers = #tpu.dot_dimension_numbers<[1], [0], [0], [1], [0, 0, 1, 1], [], []>} : vector<64x64xf32>, vector<64x128xf32>, vector<64x128xf32> -> vector<64x128xf32>
    %c0_11 = arith.constant 0 : index
    %c0_12 = arith.constant 0 : index
    %18 = vector.load %arg5[%c0_11, %c0_12] : memref<64x1xf32, #tpu.memory_space<vmem>>, vector<64x1xf32>
    %19 = vector.broadcast %18 : vector<64x1xf32> to vector<64x128xf32>
    %20 = arith.addf %17, %19 : vector<64x128xf32>
    %cst_13 = arith.constant 0.000000e+00 : f32
    %21 = vector.broadcast %cst_13 : f32 to vector<64x128xf32>
    %22 = arith.maximumf %20, %21 : vector<64x128xf32>
    %c0_14 = arith.constant 0 : index
    %c0_15 = arith.constant 0 : index
    %23 = vector.load %arg6[%c0_14, %c0_15] : memref<8x64xf32, #tpu.memory_space<vmem>>, vector<8x64xf32>
    %cst_16 = arith.constant dense<0.000000e+00> : vector<8x128xf32>
    %24 = tpu.matmul %23, %22, %cst_16 {dimension_numbers = #tpu.dot_dimension_numbers<[1], [0], [0], [1], [0, 0, 1, 1], [], []>} : vector<8x64xf32>, vector<64x128xf32>, vector<8x128xf32> -> vector<8x128xf32>
    %c0_17 = arith.constant 0 : index
    %c0_18 = arith.constant 0 : index
    %25 = vector.load %arg7[%c0_17, %c0_18] : memref<8x1xf32, #tpu.memory_space<vmem>>, vector<8x1xf32>
    %26 = vector.broadcast %25 : vector<8x1xf32> to vector<8x128xf32>
    %27 = arith.addf %24, %26 : vector<8x128xf32>
    %c0_19 = arith.constant 0 : index
    %c0_20 = arith.constant 0 : index
    %28 = vector.load %arg8[%c0_19, %c0_20] : memref<8x128xf32, #tpu.memory_space<vmem>>, vector<8x128xf32>
    tpu.vector_store %arg8[%c0_19, %c0_20], %27 {strides = array<i32>} : memref<8x128xf32, #tpu.memory_space<vmem>>, vector<8x128xf32>,
    return
  }
  func.func @transform_0(%arg0: i32) -> (i32, i32) {
    %c0_i32 = arith.constant 0 : i32
    %c0_i32_0 = arith.constant 0 : i32
    return %c0_i32, %arg0 : i32, i32
  }
  func.func @transform_1(%arg0: i32) -> (i32, i32) {
    %c0_i32 = arith.constant 0 : i32
    %c0_i32_0 = arith.constant 0 : i32
    %c0_i32_1 = arith.constant 0 : i32
    return %c0_i32, %c0_i32_0 : i32, i32
  }
  func.func @transform_2(%arg0: i32) -> (i32, i32) {
    %c0_i32 = arith.constant 0 : i32
    %c0_i32_0 = arith.constant 0 : i32
    %c0_i32_1 = arith.constant 0 : i32
    return %c0_i32, %c0_i32_0 : i32, i32
  }
  func.func @transform_3(%arg0: i32) -> (i32, i32) {
    %c0_i32 = arith.constant 0 : i32
    %c0_i32_0 = arith.constant 0 : i32
    %c0_i32_1 = arith.constant 0 : i32
    return %c0_i32, %c0_i32_0 : i32, i32
  }
  func.func @transform_4(%arg0: i32) -> (i32, i32) {
    %c0_i32 = arith.constant 0 : i32
    %c0_i32_0 = arith.constant 0 : i32
    %c0_i32_1 = arith.constant 0 : i32
    return %c0_i32, %c0_i32_0 : i32, i32
  }
  func.func @transform_5(%arg0: i32) -> (i32, i32) {
    %c0_i32 = arith.constant 0 : i32
    %c0_i32_0 = arith.constant 0 : i32
    %c0_i32_1 = arith.constant 0 : i32
    return %c0_i32, %c0_i32_0 : i32, i32
  }
  func.func @transform_6(%arg0: i32) -> (i32, i32) {
    %c0_i32 = arith.constant 0 : i32
    %c0_i32_0 = arith.constant 0 : i32
    %c0_i32_1 = arith.constant 0 : i32
    return %c0_i32, %c0_i32_0 : i32, i32
  }
  func.func @transform_7(%arg0: i32) -> (i32, i32) {
    %c0_i32 = arith.constant 0 : i32
    %c0_i32_0 = arith.constant 0 : i32
    return %c0_i32, %arg0 : i32, i32
  }
}

</mosaic_0001>

<llo_original>
// kernel: qnet_forward.1
$region0: #{qnet_forward.1}
  #allocation0 [shape = 'u32[]', space=smem, size = 0x4, offset = 0x4, fixed_abs, tag = 'smem constant byte address 0x4 - core index']
  #allocation1 [shape = 'u32[144,128]{1,0:T(1,128)}', space=vmem, size = 0x12000, scoped, tag = 'internal scratch']
  %s0 = inlined_call_operand.vmem [shape: f32[2,128], index: 0, kind: input, shape index: {}]
  %s1 = inlined_call_operand.vmem [shape: f32[64,2], index: 1, kind: input, shape index: {}]
  %s2 = inlined_call_operand.vmem [shape: f32[64,1], index: 2, kind: input, shape index: {}]
  %s3 = inlined_call_operand.vmem [shape: f32[64,64], index: 3, kind: input, shape index: {}]
  %s4 = inlined_call_operand.vmem [shape: f32[64,1], index: 4, kind: input, shape index: {}]
  %s5 = inlined_call_operand.vmem [shape: f32[8,64], index: 5, kind: input, shape index: {}]
  %s6 = inlined_call_operand.vmem [shape: f32[8,1], index: 6, kind: input, shape index: {}]
  %s7 = inlined_call_operand.vmem [shape: f32[8,128], index: 7, kind: output, shape index: {}]
  %s8 = sld [smem:[#allocation0]]
  $region38: #{qnet_forward.1} parent=0
    _
  %s10 = ssub.s32 1, %s8
  %s11 = scalar_select 0, %s10, %s8
  // Predicated region
  $region2: #{qnet_forward.1} parent=0 // pred_check
    _
  $region3: #{qnet_forward.1} parent=0 // pred_check_branch
    %13 = sbr.rel (0) target = $region5
  $region4: #{qnet_forward.1} parent=0 // pred_region
    _
  $region5: #{qnet_forward.1} parent=0 // pred_fallthru
    _
  // Predicated region
  $region6: #{qnet_forward.1} parent=0 // pred_check
    _
  $region7: #{qnet_forward.1} parent=0 // pred_check_branch
    %15 = sbr.rel (0) target = $region9
  $region8: #{qnet_forward.1} parent=0 // pred_region
    _
  $region9: #{qnet_forward.1} parent=0 // pred_fallthru
    _
  // Predicated region
  $region10: #{qnet_forward.1} parent=0 // pred_check
    _
  $region11: #{qnet_forward.1} parent=0 // pred_check_branch
    %17 = sbr.rel (0) target = $region13
  $region12: #{qnet_forward.1} parent=0 // pred_region
    _
  $region13: #{qnet_forward.1} parent=0 // pred_fallthru
    _
  // Predicated region
  $region14: #{qnet_forward.1} parent=0 // pred_check
    _
  $region15: #{qnet_forward.1} parent=0 // pred_check_branch
    %19 = sbr.rel (0) target = $region17
  $region16: #{qnet_forward.1} parent=0 // pred_region
    _
  $region17: #{qnet_forward.1} parent=0 // pred_fallthru
    _
  // Predicated region
  $region18: #{qnet_forward.1} parent=0 // pred_check
    _
  $region19: #{qnet_forward.1} parent=0 // pred_check_branch
    %21 = sbr.rel (0) target = $region21
  $region20: #{qnet_forward.1} parent=0 // pred_region
    _
  $region21: #{qnet_forward.1} parent=0 // pred_fallthru
    _
  // Predicated region
  $region22: #{qnet_forward.1} parent=0 // pred_check
    _
  $region23: #{qnet_forward.1} parent=0 // pred_check_branch
    %23 = sbr.rel (0) target = $region25
  $region24: #{qnet_forward.1} parent=0 // pred_region
    _
  $region25: #{qnet_forward.1} parent=0 // pred_fallthru
    _
  // Predicated region
  $region26: #{qnet_forward.1} parent=0 // pred_check
    _
  $region27: #{qnet_forward.1} parent=0 // pred_check_branch
    %25 = sbr.rel (0) target = $region29
  $region28: #{qnet_forward.1} parent=0 // pred_region
    _
  $region29: #{qnet_forward.1} parent=0 // pred_fallthru
    _
  %v26 = vld [vmem:[%s0] sm:$0x1]
  %v27 = vld [vmem:[%s0 + $0x1] sm:$0x1]
  %v28 = vld [vmem:[%s1] sm:$0xff]
  %v29 = vld [vmem:[%s1 + $0x8] sm:$0xff]
  %v30 = vld [vmem:[%s1 + $0x10] sm:$0xff]
  %v31 = vld [vmem:[%s1 + $0x18] sm:$0xff]
  %v32 = vld [vmem:[%s1 + $0x20] sm:$0xff]
  %v33 = vld [vmem:[%s1 + $0x28] sm:$0xff]
  %v34 = vld [vmem:[%s1 + $0x30] sm:$0xff]
  %v35 = vld [vmem:[%s1 + $0x38] sm:$0xff]
  %37 = vset.pattern.permute.xlu0 0
  %38 = vperm.xlu0 %37, %v28
  %v39 = vpop.permute.xlu0 %38
  %42 = vset.pattern.permute.xlu0 0
  %43 = vperm.xlu0 %42, %v29
  %v44 = vpop.permute.xlu0 %43
  %47 = vset.pattern.permute.xlu0 0
  %48 = vperm.xlu0 %47, %v30
  %v49 = vpop.permute.xlu0 %48
  %52 = vset.pattern.permute.xlu0 0
  %53 = vperm.xlu0 %52, %v31
  %v54 = vpop.permute.xlu0 %53
  %57 = vset.pattern.permute.xlu0 0
  %58 = vperm.xlu0 %57, %v32
  %v59 = vpop.permute.xlu0 %58
  %62 = vset.pattern.permute.xlu0 0
  %63 = vperm.xlu0 %62, %v33
  %v64 = vpop.permute.xlu0 %63
  %67 = vset.pattern.permute.xlu0 0
  %68 = vperm.xlu0 %67, %v34
  %v69 = vpop.permute.xlu0 %68
  %72 = vset.pattern.permute.xlu0 0
  %73 = vperm.xlu0 %72, %v35
  %v74 = vpop.permute.xlu0 %73
  %v76 = vlaneseq
  %v77 = vshrl.u32 %v76, 7
  %v78 = vsub.s32 0, %v77
  %v79 = vrot.slane %v26, %v78
  %v80 = vmul.f32 %v39, %v79
  %v81 = vmul.f32 %v44, %v79
  %v82 = vmul.f32 %v49, %v79
  %v83 = vmul.f32 %v54, %v79
  %v84 = vmul.f32 %v59, %v79
  %v85 = vmul.f32 %v64, %v79
  %v86 = vmul.f32 %v69, %v79
  %v87 = vmul.f32 %v74, %v79
  %88 = vset.pattern.permute.xlu0 1
  %89 = vperm.xlu0 %88, %v28
  %v90 = vpop.permute.xlu0 %89
  %92 = vset.pattern.permute.xlu0 1
  %93 = vperm.xlu0 %92, %v29
  %v94 = vpop.permute.xlu0 %93
  %96 = vset.pattern.permute.xlu0 1
  %97 = vperm.xlu0 %96, %v30
  %v98 = vpop.permute.xlu0 %97
  %100 = vset.pattern.permute.xlu0 1
  %101 = vperm.xlu0 %100, %v31
  %v102 = vpop.permute.xlu0 %101
  %104 = vset.pattern.permute.xlu0 1
  %105 = vperm.xlu0 %104, %v32
  %v106 = vpop.permute.xlu0 %105
  %108 = vset.pattern.permute.xlu0 1
  %109 = vperm.xlu0 %108, %v33
  %v110 = vpop.permute.xlu0 %109
  %112 = vset.pattern.permute.xlu0 1
  %113 = vperm.xlu0 %112, %v34
  %v114 = vpop.permute.xlu0 %113
  %116 = vset.pattern.permute.xlu0 1
  %117 = vperm.xlu0 %116, %v35
  %v118 = vpop.permute.xlu0 %117
  %v120 = vlaneseq
  %v121 = vshrl.u32 %v120, 7
  %v122 = vsub.s32 0, %v121
  %v123 = vrot.slane %v27, %v122
  %v124 = vmul.f32 %v90, %v123
  %v125 = vmul.f32 %v94, %v123
  %v126 = vmul.f32 %v98, %v123
  %v127 = vmul.f32 %v102, %v123
  %v128 = vmul.f32 %v106, %v123
  %v129 = vmul.f32 %v110, %v123
  %v130 = vmul.f32 %v114, %v123
  %v131 = vmul.f32 %v118, %v123
  %v132 = vadd.f32 %v80, %v124
  %v133 = vadd.f32 %v81, %v125
  %v134 = vadd.f32 %v82, %v126
  %v135 = vadd.f32 %v83, %v127
  %v136 = vadd.f32 %v84, %v128
  %v137 = vadd.f32 %v85, %v129
  %v138 = vadd.f32 %v86, %v130
  %v139 = vadd.f32 %v87, %v131
  %v140 = vld [vmem:[%s2] sm:$0xff]
  %v141 = vld [vmem:[%s2 + $0x8] sm:$0xff]
  %v142 = vld [vmem:[%s2 + $0x10] sm:$0xff]
  %v143 = vld [vmem:[%s2 + $0x18] sm:$0xff]
  %v144 = vld [vmem:[%s2 + $0x20] sm:$0xff]
  %v145 = vld [vmem:[%s2 + $0x28] sm:$0xff]
  %v146 = vld [vmem:[%s2 + $0x30] sm:$0xff]
  %v147 = vld [vmem:[%s2 + $0x38] sm:$0xff]
  %149 = vset.pattern.permute.xlu0 0
  %150 = vperm.xlu0 %149, %v140
  %v151 = vpop.permute.xlu0 %150
  %154 = vset.pattern.permute.xlu0 0
  %155 = vperm.xlu0 %154, %v141
  %v156 = vpop.permute.xlu0 %155
  %159 = vset.pattern.permute.xlu0 0
  %160 = vperm.xlu0 %159, %v142
  %v161 = vpop.permute.xlu0 %160
  %164 = vset.pattern.permute.xlu0 0
  %165 = vperm.xlu0 %164, %v143
  %v166 = vpop.permute.xlu0 %165
  %169 = vset.pattern.permute.xlu0 0
  %170 = vperm.xlu0 %169, %v144
  %v171 = vpop.permute.xlu0 %170
  %174 = vset.pattern.permute.xlu0 0
  %175 = vperm.xlu0 %174, %v145
  %v176 = vpop.permute.xlu0 %175
  %179 = vset.pattern.permute.xlu0 0
  %180 = vperm.xlu0 %179, %v146
  %v181 = vpop.permute.xlu0 %180
  %184 = vset.pattern.permute.xlu0 0
  %185 = vperm.xlu0 %184, %v147
  %v186 = vpop.permute.xlu0 %185
  %v188 = vadd.f32 %v132, %v151
  %v189 = vadd.f32 %v133, %v156
  %v190 = vadd.f32 %v134, %v161
  %v191 = vadd.f32 %v135, %v166
  %v192 = vadd.f32 %v136, %v171
  %v193 = vadd.f32 %v137, %v176
  %v194 = vadd.f32 %v138, %v181
  %v195 = vadd.f32 %v139, %v186
  %v196 = vmax.f32 %v188, 0.0
  %v197 = vmax.f32 %v189, 0.0
  %v198 = vmax.f32 %v190, 0.0
  %v199 = vmax.f32 %v191, 0.0
  %v200 = vmax.f32 %v192, 0.0
  %v201 = vmax.f32 %v193, 0.0
  %v202 = vmax.f32 %v194, 0.0
  %v203 = vmax.f32 %v195, 0.0
  %v204 = vld [vmem:[%s3] sm:$0xff]
  %v205 = vld [vmem:[%s3 + $0x8] sm:$0xff]
  %v206 = vld [vmem:[%s3 + $0x10] sm:$0xff]
  %v207 = vld [vmem:[%s3 + $0x18] sm:$0xff]
  %v208 = vld [vmem:[%s3 + $0x20] sm:$0xff]
  %v209 = vld [vmem:[%s3 + $0x28] sm:$0xff]
  %v210 = vld [vmem:[%s3 + $0x30] sm:$0xff]
  %v211 = vld [vmem:[%s3 + $0x38] sm:$0xff]
  %v212 = vld [vmem:[%s4] sm:$0xff]
  %v213 = vld [vmem:[%s4 + $0x8] sm:$0xff]
  %v214 = vld [vmem:[%s4 + $0x10] sm:$0xff]
  %v215 = vld [vmem:[%s4 + $0x18] sm:$0xff]
  %v216 = vld [vmem:[%s4 + $0x20] sm:$0xff]
  %v217 = vld [vmem:[%s4 + $0x28] sm:$0xff]
  %v218 = vld [vmem:[%s4 + $0x30] sm:$0xff]
  %v219 = vld [vmem:[%s4 + $0x38] sm:$0xff]
  %221 = vset.pattern.permute.xlu0 0
  %222 = vperm.xlu0 %221, %v212
  %v223 = vpop.permute.xlu0 %222
  %226 = vset.pattern.permute.xlu0 0
  %227 = vperm.xlu0 %226, %v213
  %v228 = vpop.permute.xlu0 %227
  %231 = vset.pattern.permute.xlu0 0
  %232 = vperm.xlu0 %231, %v214
  %v233 = vpop.permute.xlu0 %232
  %236 = vset.pattern.permute.xlu0 0
  %237 = vperm.xlu0 %236, %v215
  %v238 = vpop.permute.xlu0 %237
  %241 = vset.pattern.permute.xlu0 0
  %242 = vperm.xlu0 %241, %v216
  %v243 = vpop.permute.xlu0 %242
  %246 = vset.pattern.permute.xlu0 0
  %247 = vperm.xlu0 %246, %v217
  %v248 = vpop.permute.xlu0 %247
  %251 = vset.pattern.permute.xlu0 0
  %252 = vperm.xlu0 %251, %v218
  %v253 = vpop.permute.xlu0 %252
  %256 = vset.pattern.permute.xlu0 0
  %257 = vperm.xlu0 %256, %v219
  %v258 = vpop.permute.xlu0 %257
  %vm260 = vcmask 523264
  %v262 = vsel %vm260, %v204, 0
  %v265 = vsel %vm260, %v205, 0
  %v268 = vsel %vm260, %v206, 0
  %v271 = vsel %vm260, %v207, 0
  %v274 = vsel %vm260, %v208, 0
  %v277 = vsel %vm260, %v209, 0
  %v280 = vsel %vm260, %v210, 0
  %v283 = vsel %vm260, %v211, 0
  %285 = vmatprep.subr.mxu0 0.0
  %286 = vmatpush1.msra.mxu0 %v196
  %287 = vmatprep.subr.mxu0 0.0
  %288 = vmatpush1.msra.mxu0 %v197
  %289 = vmatprep.subr.mxu0 0.0
  %290 = vmatpush1.msra.mxu0 %v198
  %291 = vmatprep.subr.mxu0 0.0
  %292 = vmatpush1.msra.mxu0 %v199
  %293 = vmatprep.subr.mxu0 0.0
  %294 = vmatpush1.msra.mxu0 %v200
  %295 = vmatprep.subr.mxu0 0.0
  %296 = vmatpush1.msra.mxu0 %v201
  %297 = vmatprep.subr.mxu0 0.0
  %298 = vmatpush1.msra.mxu0 %v202
  %299 = vmatprep.subr.mxu0 0.0
  %300 = vmatpush1.msra.mxu0 %v203
  %301 = vmatprep.subr.mxu0 0.0
  %302 = vmatpush1.msra.mxu0 0.0
  %303 = vmatprep.subr.mxu0 0.0
  %304 = vmatpush1.msra.mxu0 0.0
  %305 = vmatprep.subr.mxu0 0.0
  %306 = vmatpush1.msra.mxu0 0.0
  %307 = vmatprep.subr.mxu0 0.0
  %308 = vmatpush1.msra.mxu0 0.0
  %309 = vmatprep.subr.mxu0 0.0
  %310 = vmatpush1.msra.mxu0 0.0
  %311 = vmatprep.subr.mxu0 0.0
  %312 = vmatpush1.msra.mxu0 0.0
  %313 = vmatprep.subr.mxu0 0.0
  %314 = vmatpush1.msra.mxu0 0.0
  %315 = vmatprep.subr.mxu0 0.0
  %316 = vmatpush1.msra.mxu0 0.0
  %317 = vmatprep.subr.mxu0 0.0
  %318 = vmatpush1.msra.mxu0 0.0
  %319 = vmatprep.subr.mxu0 0.0
  %320 = vmatpush1.msra.mxu0 0.0
  %321 = vmatprep.subr.mxu0 0.0
  %322 = vmatpush1.msra.mxu0 0.0
  %323 = vmatprep.subr.mxu0 0.0
  %324 = vmatpush1.msra.mxu0 0.0
  %325 = vmatprep.subr.mxu0 0.0
  %326 = vmatpush1.msra.mxu0 0.0
  %327 = vmatprep.subr.mxu0 0.0
  %328 = vmatpush1.msra.mxu0 0.0
  %329 = vmatprep.subr.mxu0 0.0
  %330 = vmatpush1.msra.mxu0 0.0
  %331 = vmatprep.subr.mxu0 0.0
  %332 = vmatpush1.msra.mxu0 0.0
  %333 = vmatprep.subr.mxu0 0.0
  %334 = vmatpush1.msra.mxu0 0.0
  %335 = vmatprep.subr.mxu0 0.0
  %336 = vmatpush1.msra.mxu0 0.0
  %337 = vmatprep.subr.mxu0 0.0
  %338 = vmatpush1.msra.mxu0 0.0
  %339 = vmatprep.subr.mxu0 0.0
  %340 = vmatpush1.msra.mxu0 0.0
  %341 = vmatprep.subr.mxu0 0.0
  %342 = vmatpush1.msra.mxu0 0.0
  %343 = vmatprep.subr.mxu0 0.0
  %344 = vmatpush1.msra.mxu0 0.0
  %345 = vmatprep.subr.mxu0 0.0
  %346 = vmatpush1.msra.mxu0 0.0
  %347 = vmatprep.subr.mxu0 0.0
  %348 = vmatpush1.msra.mxu0 0.0
  %349 = vmatprep.mubr.f32.mxu0 0.0
  %350 = vmatmul.mubr.f32.gmra.mrb[0].mxu0 %v262
  %v351 = vpop.f32.mrb[0].mxu0
  %v352 = vadd.f32 %v223, %v351
  %v353 = vpop.f32.mrb[0].mxu0
  %354 = vmatprep.mubr.f32.mxu0 0.0
  %355 = vmatmul.mubr.f32.gmra.mrb[0].mxu0 %v265
  %v356 = vpop.f32.mrb[0].mxu0
  %v357 = vadd.f32 %v228, %v356
  %v358 = vpop.f32.mrb[0].mxu0
  %359 = vmatprep.mubr.f32.mxu0 0.0
  %360 = vmatmul.mubr.f32.gmra.mrb[0].mxu0 %v268
  %v361 = vpop.f32.mrb[0].mxu0
  %v362 = vadd.f32 %v233, %v361
  %v363 = vpop.f32.mrb[0].mxu0
  %364 = vmatprep.mubr.f32.mxu0 0.0
  %365 = vmatmul.mubr.f32.gmra.mrb[0].mxu0 %v271
  %v366 = vpop.f32.mrb[0].mxu0
  %v367 = vadd.f32 %v238, %v366
  %v368 = vpop.f32.mrb[0].mxu0
  %369 = vmatprep.mubr.f32.mxu0 0.0
  %370 = vmatmul.mubr.f32.gmra.mrb[0].mxu0 %v274
  %v371 = vpop.f32.mrb[0].mxu0
  %v372 = vadd.f32 %v243, %v371
  %v373 = vpop.f32.mrb[0].mxu0
  %374 = vmatprep.mubr.f32.mxu0 0.0
  %375 = vmatmul.mubr.f32.gmra.mrb[0].mxu0 %v277
  %v376 = vpop.f32.mrb[0].mxu0
  %v377 = vadd.f32 %v248, %v376
  %v378 = vpop.f32.mrb[0].mxu0
  %379 = vmatprep.mubr.f32.mxu0 0.0
  %380 = vmatmul.mubr.f32.gmra.mrb[0].mxu0 %v280
  %v381 = vpop.f32.mrb[0].mxu0
  %v382 = vadd.f32 %v253, %v381
  %v383 = vpop.f32.mrb[0].mxu0
  %384 = vmatprep.mubr.f32.mxu0 0.0
  %385 = vmatmul.mubr.f32.gmra.mrb[0].mxu0 %v283
  %v386 = vpop.f32.mrb[0].mxu0
  %v387 = vadd.f32 %v258, %v386
  %v388 = vpop.f32.mrb[0].mxu0
  %389 = vdwg.mxu0
  %v390 = vmax.f32 %v352, 0.0
  %v391 = vmax.f32 %v357, 0.0
  %v392 = vmax.f32 %v362, 0.0
  %v393 = vmax.f32 %v367, 0.0
  %v394 = vmax.f32 %v372, 0.0
  %v395 = vmax.f32 %v377, 0.0
  %v396 = vmax.f32 %v382, 0.0
  %v397 = vmax.f32 %v387, 0.0
  %v398 = vld [vmem:[%s5] sm:$0xff]
  %v399 = vld [vmem:[%s6] sm:$0xff]
  %401 = vset.pattern.permute.xlu0 0
  %402 = vperm.xlu0 %401, %v399
  %v403 = vpop.permute.xlu0 %402
  %v406 = vsel %vm260, %v398, 0
  %408 = vmatprep.subr.mxu0 0.0
  %409 = vmatpush1.msra.mxu0 %v390
  %410 = vmatprep.subr.mxu0 0.0
  %411 = vmatpush1.msra.mxu0 %v391
  %412 = vmatprep.subr.mxu0 0.0
  %413 = vmatpush1.msra.mxu0 %v392
  %414 = vmatprep.subr.mxu0 0.0
  %415 = vmatpush1.msra.mxu0 %v393
  %416 = vmatprep.subr.mxu0 0.0
  %417 = vmatpush1.msra.mxu0 %v394
  %418 = vmatprep.subr.mxu0 0.0
  %419 = vmatpush1.msra.mxu0 %v395
  %420 = vmatprep.subr.mxu0 0.0
  %421 = vmatpush1.msra.mxu0 %v396
  %422 = vmatprep.subr.mxu0 0.0
  %423 = vmatpush1.msra.mxu0 %v397
  %424 = vmatprep.subr.mxu0 0.0
  %425 = vmatpush1.msra.mxu0 0.0
  %426 = vmatprep.subr.mxu0 0.0
  %427 = vmatpush1.msra.mxu0 0.0
  %428 = vmatprep.subr.mxu0 0.0
  %429 = vmatpush1.msra.mxu0 0.0
  %430 = vmatprep.subr.mxu0 0.0
  %431 = vmatpush1.msra.mxu0 0.0
  %432 = vmatprep.subr.mxu0 0.0
  %433 = vmatpush1.msra.mxu0 0.0
  %434 = vmatprep.subr.mxu0 0.0
  %435 = vmatpush1.msra.mxu0 0.0
  %436 = vmatprep.subr.mxu0 0.0
  %437 = vmatpush1.msra.mxu0 0.0
  %438 = vmatprep.subr.mxu0 0.0
  %439 = vmatpush1.msra.mxu0 0.0
  %440 = vmatprep.subr.mxu0 0.0
  %441 = vmatpush1.msra.mxu0 0.0
  %442 = vmatprep.subr.mxu0 0.0
  %443 = vmatpush1.msra.mxu0 0.0
  %444 = vmatprep.subr.mxu0 0.0
  %445 = vmatpush1.msra.mxu0 0.0
  %446 = vmatprep.subr.mxu0 0.0
  %447 = vmatpush1.msra.mxu0 0.0
  %448 = vmatprep.subr.mxu0 0.0
  %449 = vmatpush1.msra.mxu0 0.0
  %450 = vmatprep.subr.mxu0 0.0
  %451 = vmatpush1.msra.mxu0 0.0
  %452 = vmatprep.subr.mxu0 0.0
  %453 = vmatpush1.msra.mxu0 0.0
  %454 = vmatprep.subr.mxu0 0.0
  %455 = vmatpush1.msra.mxu0 0.0
  %456 = vmatprep.subr.mxu0 0.0
  %457 = vmatpush1.msra.mxu0 0.0
  %458 = vmatprep.subr.mxu0 0.0
  %459 = vmatpush1.msra.mxu0 0.0
  %460 = vmatprep.subr.mxu0 0.0
  %461 = vmatpush1.msra.mxu0 0.0
  %462 = vmatprep.subr.mxu0 0.0
  %463 = vmatpush1.msra.mxu0 0.0
  %464 = vmatprep.subr.mxu0 0.0
  %465 = vmatpush1.msra.mxu0 0.0
  %466 = vmatprep.subr.mxu0 0.0
  %467 = vmatpush1.msra.mxu0 0.0
  %468 = vmatprep.subr.mxu0 0.0
  %469 = vmatpush1.msra.mxu0 0.0
  %470 = vmatprep.subr.mxu0 0.0
  %471 = vmatpush1.msra.mxu0 0.0
  %472 = vmatprep.mubr.f32.mxu0 0.0
  %473 = vmatmul.mubr.f32.gmra.mrb[0].mxu0 %v406
  %v474 = vpop.f32.mrb[0].mxu0
  %v475 = vadd.f32 %v403, %v474
  %v476 = vpop.f32.mrb[0].mxu0
  %477 = vdwg.mxu0
  %478 = vst [vmem:[%s7] sm:$0xff] %v475
  // Predicated region
  $region30: #{qnet_forward.1} parent=0 // pred_check
    _
  $region31: #{qnet_forward.1} parent=0 // pred_check_branch
    %480 = sbr.rel (0) target = $region33
  $region32: #{qnet_forward.1} parent=0 // pred_region
    _
  $region33: #{qnet_forward.1} parent=0 // pred_fallthru
    _
  // Predicated region
  $region34: #{qnet_forward.1} parent=0 // pred_check
    _
  $region35: #{qnet_forward.1} parent=0 // pred_check_branch
    %482 = sbr.rel (0) target = $region37
  $region36: #{qnet_forward.1} parent=0 // pred_region
    _
  $region37: #{qnet_forward.1} parent=0 // pred_fallthru
    _

</llo_original>
